<compile_context>
chip_gen: v6e
topology: v6e:2x2x1
jax: 0.10.0
libtpu: 0.0.40
codegen_flags: <defaults>
</compile_context>

<pallas_src>
import jax
import jax.numpy as jnp
from jax.experimental import pallas as pl
from jax.experimental.pallas import tpu as pltpu

LN_EPS = 1e-5
_TARGET_SLAB_BYTES = 4 << 20  # x + pos + out bytes per grid step (~4 MiB)


def _embed_ln_kernel(x_ref, pos_ref, gamma_ref, beta_ref, o_ref):
    # x_ref / o_ref / pos_ref: (TL, D); gamma_ref / beta_ref: (1, D) f32.
    h = x_ref[...].astype(jnp.float32) + pos_ref[...].astype(jnp.float32)

    # LayerNorm over the hidden dim. Two-pass (centered) form for numerical
    # stability; 'centered' is reused for the variance so the tile is swept
    # only twice by the VALU and once per reduction by the XLU.
    mean = jnp.mean(h, axis=-1, keepdims=True)
    centered = h - mean
    var = jnp.mean(centered * centered, axis=-1, keepdims=True)
    inv = jax.lax.rsqrt(var + LN_EPS)

    # FMA-shaped epilogue: normed * gamma + beta (params pre-cast f32).
    o_ref[...] = (centered * inv * gamma_ref[...] + beta_ref[...]).astype(o_ref.dtype)


def _pick_seq_tile(L, row_bytes, seq_tile=None):
    """Largest multiple-of-8 row count whose (x+pos+out) slab is ~4 MiB."""
    if seq_tile is not None:
        return min(L, seq_tile)
    rows = (_TARGET_SLAB_BYTES // max(row_bytes, 1)) // 8 * 8
    rows = max(8, rows)
    return min(L, rows)


def query_feat_embeddings(input_feat, pos_table, gamma, beta,
                          position_ids=None, seq_tile=None):
    """input_feat: (N, L, D); pos_table: (max_pos, D); gamma/beta: (D,)."""
    N, L, D = input_feat.shape
    assert L <= pos_table.shape[0], (
        f"sequence length {L} exceeds max_position_embeddings {pos_table.shape[0]}")

    # Embedding lookup as JAX glue (gather / contiguous slice of the table),
    # cast to the activation dtype so pos HBM traffic matches x traffic.
    if position_ids is None:
        pos = pos_table[:L]                                   # (L, D), shared
    else:
        position_ids = jnp.asarray(position_ids)
        if position_ids.ndim == 1:
            pos = pos_table[position_ids]                     # (L, D), shared
        elif position_ids.shape[0] == 1:
            pos = pos_table[position_ids[0]]                  # (L, D), shared
        else:
            # TODO(synk): per-batch ids could instead be scalar-prefetched and
            # gathered row-wise inside the pipeline to avoid the (N, L, D)
            # materialization; casting to the activation dtype below keeps the
            # extra traffic bounded in the meantime.
            pos = pos_table[position_ids]                     # (N, L, D), per-batch
    pos = pos.astype(input_feat.dtype)
    per_batch_pos = (pos.ndim == 3)

    bytes_x = input_feat.dtype.itemsize
    bytes_pos = pos.dtype.itemsize
    bytes_out = bytes_x
    row_bytes = D * (bytes_x + bytes_pos + bytes_out)
    TL = _pick_seq_tile(L, row_bytes, seq_tile)
    L_tiles = pl.cdiv(L, TL)

    param_spec = pl.BlockSpec((1, D), lambda a, b: (0, 0))

    if L_tiles > 1:
        # Seq-tiles outermost: shared pos block index is constant across the
        # inner batch loop -> Pallas skips the re-DMA (pos read once per tile).
        grid = (L_tiles, N)
        x_spec = pl.BlockSpec((None, TL, D), lambda l, n: (n, l, 0))
        out_spec = pl.BlockSpec((None, TL, D), lambda l, n: (n, l, 0))
        if per_batch_pos:
            pos_spec = pl.BlockSpec((None, TL, D), lambda l, n: (n, l, 0))
        else:
            pos_spec = pl.BlockSpec((TL, D), lambda l, n: (l, 0))
    else:
        # Single seq tile: put batch first so v7x megacore shards over N.
        grid = (N, L_tiles)
        x_spec = pl.BlockSpec((None, TL, D), lambda n, l: (n, l, 0))
        out_spec = pl.BlockSpec((None, TL, D), lambda n, l: (n, l, 0))
        if per_batch_pos:
            pos_spec = pl.BlockSpec((None, TL, D), lambda n, l: (n, l, 0))
        else:
            pos_spec = pl.BlockSpec((TL, D), lambda n, l: (l, 0))

    gamma2d = gamma.astype(jnp.float32).reshape(1, D)
    beta2d = beta.astype(jnp.float32).reshape(1, D)

    cost = pl.CostEstimate(
        flops=int(10 * N * L * D),
        transcendentals=int(N * L),
        bytes_accessed=int(N * L * D * (bytes_x + bytes_out)
                           + pos.size * bytes_pos + 2 * D * 4),
    )

    out = pl.pallas_call(
        _embed_ln_kernel,
        out_shape=jax.ShapeDtypeStruct((N, L, D), input_feat.dtype),
        grid_spec=pltpu.PrefetchScalarGridSpec(
            num_scalar_prefetch=0,
            grid=grid,
            in_specs=[x_spec, pos_spec, param_spec, param_spec],
            out_specs=out_spec,
        ),
        compiler_params=pltpu.CompilerParams(
            dimension_semantics=("parallel", "parallel")),
        cost_estimate=cost,
    )(input_feat, pos, gamma2d, beta2d)
    # Dropout is identity in eval mode (hidden_dropout_prob only active in training).
    return out


def _reference(input_feat, pos, gamma, beta):
    # pos: (L, D) or (N, L, D)
    if pos.ndim == 2:
        pos = pos[None]
    h = input_feat.astype(jnp.float32) + pos.astype(jnp.float32)
    mean = jnp.mean(h, axis=-1, keepdims=True)
    var = jnp.mean((h - mean) ** 2, axis=-1, keepdims=True)
    normed = (h - mean) * jax.lax.rsqrt(var + LN_EPS)
    return (normed * gamma[None, None, :].astype(jnp.float32)
            + beta[None, None, :].astype(jnp.float32)).astype(input_feat.dtype)


if __name__ == "__main__":
    # Small config consistent with the module:
    #   batch N=2, seq L=8, hidden D=32, max_position_embeddings=16
    N, L, D, MAX_POS = 2, 8, 32, 16

    key = jax.random.PRNGKey(0)
    k_x, k_pos, k_g, k_b, k_x2 = jax.random.split(key, 5)

    input_feat = jax.random.normal(k_x, (N, L, D), dtype=jnp.float32)
    pos_table = 0.02 * jax.random.normal(k_pos, (MAX_POS, D), dtype=jnp.float32)
    gamma = 1.0 + 0.1 * jax.random.normal(k_g, (D,), dtype=jnp.float32)
    beta = 0.1 * jax.random.normal(k_b, (D,), dtype=jnp.float32)

    # 1) Default position_ids (arange) path, single seq-tile grid.
    out = jax.block_until_ready(query_feat_embeddings(input_feat, pos_table, gamma, beta))
    ref = _reference(input_feat, pos_table[:L], gamma, beta)
    assert out.shape == (N, L, D)
    assert jnp.allclose(out, ref, atol=1e-5, rtol=1e-5)

    # 2) Per-batch position_ids path.
    pids = jnp.stack([jnp.arange(L), jnp.arange(L)[::-1]], axis=0)  # (N, L)
    out2 = jax.block_until_ready(
        query_feat_embeddings(input_feat, pos_table, gamma, beta, position_ids=pids))
    ref2 = _reference(input_feat, pos_table[pids], gamma, beta)
    assert jnp.allclose(out2, ref2, atol=1e-5, rtol=1e-5)

    # 3) Multi-seq-tile path (grid swapped to (L_tiles, N) so shared pos is
    #    DMA'd once per tile): L=16 with an explicit seq_tile=8 override.
    L2 = 16
    input_feat2 = jax.random.normal(k_x2, (N, L2, D), dtype=jnp.float32)
    out3 = jax.block_until_ready(
        query_feat_embeddings(input_feat2, pos_table, gamma, beta, seq_tile=8))
    ref3 = _reference(input_feat2, pos_table[:L2], gamma, beta)
    assert jnp.allclose(out3, ref3, atol=1e-5, rtol=1e-5)

    print("KERNEL_OK")
</pallas_src>

<mosaic_0001>
module attributes {stable_mosaic.version = 11 : i64} {
  func.func @_embed_ln_kernel(%arg0: i32, %arg1: i32, %arg2: memref<1x8x32xf32, #tpu.memory_space<vmem>>, %arg3: memref<8x32xf32, #tpu.memory_space<vmem>>, %arg4: memref<1x32xf32, #tpu.memory_space<vmem>>, %arg5: memref<1x32xf32, #tpu.memory_space<vmem>>, %arg6: memref<1x8x32xf32, #tpu.memory_space<vmem>>) attributes {dimension_semantics = [#tpu.dimension_semantics<parallel>, #tpu.dimension_semantics<parallel>], iteration_bounds = array<i64: 2, 1>, scalar_prefetch = 0 : i64, scratch_operands = 0 : i64, tpu.core_type = #tpu.core_type<tc>, window_params = [{transform_indices = @transform_0, window_bounds = array<i64: 1, 8, 32>}, {transform_indices = @transform_1, window_bounds = array<i64: 8, 32>}, {pipeline_mode = #tpu.pipeline_mode<synchronous>, transform_indices = @transform_2, window_bounds = array<i64: 1, 32>}, {pipeline_mode = #tpu.pipeline_mode<synchronous>, transform_indices = @transform_3, window_bounds = array<i64: 1, 32>}, {transform_indices = @transform_4, window_bounds = array<i64: 1, 8, 32>}]} {
    %c0 = arith.constant 0 : index
    %c0_0 = arith.constant 0 : index
    %c0_1 = arith.constant 0 : index
    %0 = vector.load %arg2[%c0, %c0_0, %c0_1] : memref<1x8x32xf32, #tpu.memory_space<vmem>>, vector<1x8x32xf32>
    %1 = vector.shape_cast %0 : vector<1x8x32xf32> to vector<8x32xf32>
    %c0_2 = arith.constant 0 : index
    %c0_3 = arith.constant 0 : index
    %2 = vector.load %arg3[%c0_2, %c0_3] : memref<8x32xf32, #tpu.memory_space<vmem>>, vector<8x32xf32>
    %3 = arith.addf %1, %2 : vector<8x32xf32>
    %cst = arith.constant dense<0.000000e+00> : vector<8xf32>
    %4 = vector.multi_reduction <add>, %3, %cst [1] : vector<8x32xf32> to vector<8xf32>
    %5 = vector.shape_cast %4 : vector<8xf32> to vector<8x1xf32>
    %cst_4 = arith.constant 3.200000e+01 : f32
    %6 = vector.broadcast %cst_4 : f32 to vector<8x1xf32>
    %7 = arith.divf %5, %6 : vector<8x1xf32>
    %8 = vector.broadcast %7 : vector<8x1xf32> to vector<8x32xf32>
    %9 = arith.subf %3, %8 : vector<8x32xf32>
    %10 = arith.mulf %9, %9 : vector<8x32xf32>
    %cst_5 = arith.constant dense<0.000000e+00> : vector<8xf32>
    %11 = vector.multi_reduction <add>, %10, %cst_5 [1] : vector<8x32xf32> to vector<8xf32>
    %12 = vector.shape_cast %11 : vector<8xf32> to vector<8x1xf32>
    %cst_6 = arith.constant 3.200000e+01 : f32
    %13 = vector.broadcast %cst_6 : f32 to vector<8x1xf32>
    %14 = arith.divf %12, %13 : vector<8x1xf32>
    %cst_7 = arith.constant 9.99999974E-6 : f32
    %15 = vector.broadcast %cst_7 : f32 to vector<8x1xf32>
    %16 = arith.addf %14, %15 : vector<8x1xf32>
    %17 = math.rsqrt %16 : vector<8x1xf32>
    %18 = vector.broadcast %17 : vector<8x1xf32> to vector<8x32xf32>
    %19 = arith.mulf %9, %18 : vector<8x32xf32>
    %c0_8 = arith.constant 0 : index
    %c0_9 = arith.constant 0 : index
    %20 = vector.load %arg4[%c0_8, %c0_9] : memref<1x32xf32, #tpu.memory_space<vmem>>, vector<1x32xf32>
    %21 = vector.broadcast %20 : vector<1x32xf32> to vector<8x32xf32>
    %22 = arith.mulf %19, %21 : vector<8x32xf32>
    %c0_10 = arith.constant 0 : index
    %c0_11 = arith.constant 0 : index
    %23 = vector.load %arg5[%c0_10, %c0_11] : memref<1x32xf32, #tpu.memory_space<vmem>>, vector<1x32xf32>
    %24 = vector.broadcast %23 : vector<1x32xf32> to vector<8x32xf32>
    %25 = arith.addf %22, %24 : vector<8x32xf32>
    %c0_12 = arith.constant 0 : index
    %c0_13 = arith.constant 0 : index
    %c0_14 = arith.constant 0 : index
    %26 = vector.load %arg6[%c0_12, %c0_13, %c0_14] : memref<1x8x32xf32, #tpu.memory_space<vmem>>, vector<1x8x32xf32>
    %27 = vector.shape_cast %26 : vector<1x8x32xf32> to vector<8x32xf32>
    %28 = vector.shape_cast %25 : vector<8x32xf32> to vector<1x8x32xf32>
    tpu.vector_store %arg6[%c0_12, %c0_13, %c0_14], %28 {strides = array<i32>} : memref<1x8x32xf32, #tpu.memory_space<vmem>>, vector<1x8x32xf32>,
    return
  }
  func.func @transform_0(%arg0: i32, %arg1: i32) -> (i32, i32, i32) {
    %c0_i32 = arith.constant 0 : i32
    %c0_i32_0 = arith.constant 0 : i32
    return %arg0, %arg1, %c0_i32 : i32, i32, i32
  }
  func.func @transform_1(%arg0: i32, %arg1: i32) -> (i32, i32) {
    %c0_i32 = arith.constant 0 : i32
    %c0_i32_0 = arith.constant 0 : i32
    return %arg1, %c0_i32 : i32, i32
  }
  func.func @transform_2(%arg0: i32, %arg1: i32) -> (i32, i32) {
    %c0_i32 = arith.constant 0 : i32
    %c0_i32_0 = arith.constant 0 : i32
    %c0_i32_1 = arith.constant 0 : i32
    return %c0_i32, %c0_i32_0 : i32, i32
  }
  func.func @transform_3(%arg0: i32, %arg1: i32) -> (i32, i32) {
    %c0_i32 = arith.constant 0 : i32
    %c0_i32_0 = arith.constant 0 : i32
    %c0_i32_1 = arith.constant 0 : i32
    return %c0_i32, %c0_i32_0 : i32, i32
  }
  func.func @transform_4(%arg0: i32, %arg1: i32) -> (i32, i32, i32) {
    %c0_i32 = arith.constant 0 : i32
    %c0_i32_0 = arith.constant 0 : i32
    return %arg0, %arg1, %c0_i32 : i32, i32, i32
  }
}

</mosaic_0001>

<llo_original>
// kernel: tpu_custom_call.1
$region0: #{tpu_custom_call.1}
  #allocation0 [shape = 'u32[]', space=smem, size = 0x4, offset = 0x4, fixed_abs, tag = 'smem constant byte address 0x4 - core index']
  #allocation1 [shape = 'u32[144,128]{1,0:T(1,128)}', space=vmem, size = 0x12000, scoped, tag = 'internal scratch']
  %s0 = inlined_call_operand.hbm [shape: f32[2,8,32], index: 0, kind: input, shape index: {}]
  %s1 = inlined_call_operand.hbm [shape: f32[8,32], index: 1, kind: input, shape index: {}]
  %s2 = inlined_call_operand.vmem [shape: f32[1,32], index: 2, kind: input, shape index: {}]
  %s3 = inlined_call_operand.vmem [shape: f32[1,32], index: 3, kind: input, shape index: {}]
  %s4 = inlined_call_operand.hbm [shape: f32[2,8,32], index: 4, kind: output, shape index: {}]
  %s5 = sld [smem:[#allocation0]]
  $region57: #{tpu_custom_call.1} parent=0
    _
  %s7 = ssub.s32 1, %s5
  %s8 = scalar_select 0, %s7, %s5
  $region1: #{tpu_custom_call.1} parent=0
    #allocation2 [shape = 'u8[8192]{0}', space=vmem, size = 0x2000, scoped, tag = 'input window, operand 0']
    #allocation3 [shape = 's32[2]{0}', space=sflag, size = 0x8, scoped, tag = 'scoped memory for tpu_custom_call.1']
    #allocation4 [shape = 's32[2]{0}', space=sflag, size = 0x8, scoped, tag = 'scoped memory for tpu_custom_call.1']
    #allocation5 [shape = 'u8[4096]{0}', space=vmem, size = 0x1000, scoped, tag = 'input window, operand 1, single buffered']
    #allocation6 [shape = 's32[1]{0}', space=sflag, size = 0x4, scoped, tag = 'scoped memory for tpu_custom_call.1']
    #allocation7 [shape = 'u8[8192]{0}', space=vmem, size = 0x2000, scoped, tag = 'output window, operand 0']
    %9 = vsyncpa [#allocation3], 0
    %s10 = scalar_lea.sflag [#allocation3], 1
    %11 = vsyncpa %s10, 0
    %12 = vsyncpa [#allocation6], 0
    %13 = vsyncpa [#allocation4], 0
    %s14 = scalar_lea.sflag [#allocation4], 1
    %15 = vsyncpa %s14, 0
    loop: start=0, step=1, limit=4
    $region2: #{tpu_custom_call.1} parent=1 // loop_pre_header
      _
    $region3: #{tpu_custom_call.1} parent=1 // loop_header
      %s17 = sphi 0, %s21
      %p18 = scmp.ge.s32.totalorder %s17, 4
      %s24 = sphi 0, %s36
      %s25 = sphi 0, %s32
      %s26 = sphi 0, %s24
      %s27 = sphi 0, %s25
      %s28 = sphi 0, %s26
      %s29 = sphi 0, %s27
      %s41 = sphi 0, %s43
      %s44 = sphi 0, %s41
      %s45 = sphi 0, %s44
      %s61 = sphi 0, %s45
      %s67 = sphi 0, %s69
      %s70 = sphi 0, %s67
      %s71 = sphi 0, %s70
      %s87 = sphi 0, %s71
      %s91 = sphi 0, %s91
      %s93 = sphi 0, %s91
      %s94 = sphi 0, %s93
      %s108 = sphi 0, %s94
      %s112 = sphi 0, %s112
      %s114 = sphi 0, %s112
      %s115 = sphi 0, %s114
      %s129 = sphi 0, %s115
      %s137 = sphi 0, %s139
      %s140 = sphi 0, %s137
      %s141 = sphi 0, %s140
      %s157 = sphi 0, %s141
    $region4: #{tpu_custom_call.1} parent=1 // loop_header_branch
      %20 = sbr.rel (%p18) target = $region8
    $region5: #{tpu_custom_call.1} parent=1 // loop_body
      %s22 = ssub.s32 %s17, 1
      %s23 = ssub.s32 %s17, 2
      %s30 = sadd.s32 1, %s25
      %p31 = scmp.ge.s32.totalorder %s30, 1
      %s32 = scalar_select %p31, 0, %s30
      %s33 = sadd.s32 1, %s24
      %s34 = scalar_select %p31, %s33, %s24
      %p35 = scmp.ge.s32.totalorder %s34, 2
      %s36 = scalar_select %p35, 0, %s34
      %s37 = ssub.s32 %s24, %s36
      %s38 = ssub.s32 %s25, %s32
      %s39 = sor.u32 %s37, %s38
      %p40 = scmp.eq.s32.totalorder %s39, 0
      %s42 = sadd.s32 %s41, 1
      %s43 = scalar_select %p40, %s41, %s42
      %p46 = pneg %p40
      %p47 = scmp.eq.s32.totalorder %s17, 1
      %p48 = por %p46, %p47
      %p49 = scmp.ne.s32.totalorder %s41, %s44
      %p50 = scmp.eq.s32.totalorder %s17, 0
      %p51 = por %p49, %p50
      %p52 = scmp.ne.s32.totalorder %s41, %s44
      %p53 = scmp.eq.s32.totalorder %s22, 1
      %p54 = por %p52, %p53
      %p55 = scmp.ne.s32.totalorder %s44, %s45
      %p56 = scmp.eq.s32.totalorder %s22, 0
      %p57 = por %p55, %p56
      %p58 = scmp.ne.s32.totalorder %s44, %s45
      %p59 = scmp.eq.s32.totalorder %s23, 1
      %p60 = por %p58, %p59
      %p62 = scmp.ne.s32.totalorder %s45, %s61
      %p63 = scmp.eq.s32.totalorder %s23, 0
      %p64 = por %p62, %p63
      %s65 = ssub.s32 %s25, %s32
      %p66 = scmp.eq.s32.totalorder %s65, 0
      %s68 = sadd.s32 %s67, 1
      %s69 = scalar_select %p66, %s67, %s68
      %p72 = pneg %p66
      %p73 = scmp.eq.s32.totalorder %s17, 1
      %p74 = por %p72, %p73
      %p75 = scmp.ne.s32.totalorder %s67, %s70
      %p76 = scmp.eq.s32.totalorder %s17, 0
      %p77 = por %p75, %p76
      %p78 = scmp.ne.s32.totalorder %s67, %s70
      %p79 = scmp.eq.s32.totalorder %s22, 1
      %p80 = por %p78, %p79
      %p81 = scmp.ne.s32.totalorder %s70, %s71
      %p82 = scmp.eq.s32.totalorder %s22, 0
      %p83 = por %p81, %p82
      %p84 = scmp.ne.s32.totalorder %s70, %s71
      %p85 = scmp.eq.s32.totalorder %s23, 1
      %p86 = por %p84, %p85
      %p88 = scmp.ne.s32.totalorder %s71, %s87
      %p89 = scmp.eq.s32.totalorder %s23, 0
      %p90 = por %p88, %p89
      %s92 = sadd.s32 %s91, 1
      %p95 = scmp.eq.s32.totalorder %s17, 1
      %p96 = scmp.ne.s32.totalorder %s91, %s93
      %p97 = scmp.eq.s32.totalorder %s17, 0
      %p98 = por %p96, %p97
      %p99 = scmp.ne.s32.totalorder %s91, %s93
      %p100 = scmp.eq.s32.totalorder %s22, 1
      %p101 = por %p99, %p100
      %p102 = scmp.ne.s32.totalorder %s93, %s94
      %p103 = scmp.eq.s32.totalorder %s22, 0
      %p104 = por %p102, %p103
      %p105 = scmp.ne.s32.totalorder %s93, %s94
      %p106 = scmp.eq.s32.totalorder %s23, 1
      %p107 = por %p105, %p106
      %p109 = scmp.ne.s32.totalorder %s94, %s108
      %p110 = scmp.eq.s32.totalorder %s23, 0
      %p111 = por %p109, %p110
      %s113 = sadd.s32 %s112, 1
      %p116 = scmp.eq.s32.totalorder %s17, 1
      %p117 = scmp.ne.s32.totalorder %s112, %s114
      %p118 = scmp.eq.s32.totalorder %s17, 0
      %p119 = por %p117, %p118
      %p120 = scmp.ne.s32.totalorder %s112, %s114
      %p121 = scmp.eq.s32.totalorder %s22, 1
      %p122 = por %p120, %p121
      %p123 = scmp.ne.s32.totalorder %s114, %s115
      %p124 = scmp.eq.s32.totalorder %s22, 0
      %p125 = por %p123, %p124
      %p126 = scmp.ne.s32.totalorder %s114, %s115
      %p127 = scmp.eq.s32.totalorder %s23, 1
      %p128 = por %p126, %p127
      %p130 = scmp.ne.s32.totalorder %s115, %s129
      %p131 = scmp.eq.s32.totalorder %s23, 0
      %p132 = por %p130, %p131
      %s133 = ssub.s32 %s24, %s36
      %s134 = ssub.s32 %s25, %s32
      %s135 = sor.u32 %s133, %s134
      %p136 = scmp.eq.s32.totalorder %s135, 0
      %s138 = sadd.s32 %s137, 1
      %s139 = scalar_select %p136, %s137, %s138
      %p142 = pneg %p136
      %p143 = scmp.eq.s32.totalorder %s17, 1
      %p144 = por %p142, %p143
      %p145 = scmp.ne.s32.totalorder %s137, %s140
      %p146 = scmp.eq.s32.totalorder %s17, 0
      %p147 = por %p145, %p146
      %p148 = scmp.ne.s32.totalorder %s137, %s140
      %p149 = scmp.eq.s32.totalorder %s22, 1
      %p150 = por %p148, %p149
      %p151 = scmp.ne.s32.totalorder %s140, %s141
      %p152 = scmp.eq.s32.totalorder %s22, 0
      %p153 = por %p151, %p152
      %p154 = scmp.ne.s32.totalorder %s140, %s141
      %p155 = scmp.eq.s32.totalorder %s23, 1
      %p156 = por %p154, %p155
      %p158 = scmp.ne.s32.totalorder %s141, %s157
      %p159 = scmp.eq.s32.totalorder %s23, 0
      %p160 = por %p158, %p159
      %p161 = scmp.le.s32.totalorder 1, %s17
      %p162 = scmp.lt.s32.totalorder %s17, 3
      %p163 = pnand %p161, %p162
      %p164 = pneg %p163
      // Predicated region
      $region9: #{tpu_custom_call.1} parent=5 // pred_check
        _
      $region10: #{tpu_custom_call.1} parent=5 // pred_check_branch
        %166 = sbr.rel (%p163) target = $region12
      $region11: #{tpu_custom_call.1} parent=5 // pred_region
        %s167 = ssub.s32 %s17, 1
        // Predicated region
        $region13: #{tpu_custom_call.1} parent=11 // pred_check
          %p168 = pneg %p83
        $region14: #{tpu_custom_call.1} parent=11 // pred_check_branch
          %170 = sbr.rel (%p168) target = $region16
        $region15: #{tpu_custom_call.1} parent=11 // pred_region
          %s172 = ssub.s32 128, 128
          %173 = vsyncadd [#allocation6], %s172
          %s174 = smul.addr %s27, 128
          %s175 = scalar_lea.hbm %s1, %s174
          %s177 = sshll.u32 [#allocation5], 4
          %s178 = int_to_ptr.vmem [resolvable:$true] %s177
          %180 = dma.hbm_to_vmem [thread:$0]  %s175, 128, %s178, [#allocation6]
        $region16: #{tpu_custom_call.1} parent=11 // pred_fallthru
          _
        // Predicated region
        $region17: #{tpu_custom_call.1} parent=11 // pred_check
          %p181 = pneg %p104
        $region18: #{tpu_custom_call.1} parent=11 // pred_check_branch
          %183 = sbr.rel (%p181) target = $region20
        $region19: #{tpu_custom_call.1} parent=11 // pred_region
          _
        $region20: #{tpu_custom_call.1} parent=11 // pred_fallthru
          _
        // Predicated region
        $region21: #{tpu_custom_call.1} parent=11 // pred_check
          %p184 = pneg %p125
        $region22: #{tpu_custom_call.1} parent=11 // pred_check_branch
          %186 = sbr.rel (%p184) target = $region24
        $region23: #{tpu_custom_call.1} parent=11 // pred_region
          _
        $region24: #{tpu_custom_call.1} parent=11 // pred_fallthru
          _
      $region12: #{tpu_custom_call.1} parent=5 // pred_fallthru
        _
      %p187 = scmp.lt.s32.totalorder %s17, 2
      // Predicated region
      $region25: #{tpu_custom_call.1} parent=5 // pred_check
        %p188 = pneg %p187
      $region26: #{tpu_custom_call.1} parent=5 // pred_check_branch
        %190 = sbr.rel (%p188) target = $region28
      $region27: #{tpu_custom_call.1} parent=5 // pred_region
        // Predicated region
        $region29: #{tpu_custom_call.1} parent=27 // pred_check
          %p191 = pneg %p51
        $region30: #{tpu_custom_call.1} parent=27 // pred_check_branch
          %193 = sbr.rel (%p191) target = $region32
        $region31: #{tpu_custom_call.1} parent=27 // pred_region
          %s194 = sand.u32 %s41, 1
          %s195 = scalar_lea.sflag [#allocation3], %s194
          %s196 = sand.u32 %s41, 1
          %s197 = smul.addr %s196, 8
          %s198 = scalar_lea.vmem [#allocation2], %s197
          %s200 = ssub.s32 128, 128
          %201 = vsyncadd %s195, %s200
          %s202 = sadd.s32 %s25, %s24
          %s203 = smul.addr %s202, 128
          %s204 = scalar_lea.hbm %s0, %s203
          %s206 = sshll.u32 %s198, 4
          %s207 = int_to_ptr.vmem [resolvable:$true] %s206
          %209 = dma.hbm_to_vmem [thread:$0]  %s204, 128, %s207, %s195
        $region32: #{tpu_custom_call.1} parent=27 // pred_fallthru
          _
      $region28: #{tpu_custom_call.1} parent=5 // pred_fallthru
        _
      %p210 = scmp.le.s32.totalorder 1, %s17
      %p211 = scmp.lt.s32.totalorder %s17, 3
      %p212 = pnand %p210, %p211
      %p213 = pneg %p212
      // Predicated region
      $region33: #{tpu_custom_call.1} parent=5 // pred_check
        _
      $region34: #{tpu_custom_call.1} parent=5 // pred_check_branch
        %215 = sbr.rel (%p212) target = $region36
      $region35: #{tpu_custom_call.1} parent=5 // pred_region
        %s216 = ssub.s32 %s17, 1
        %s217 = sand.u32 %s44, 1
        %s218 = scalar_lea.sflag [#allocation3], %s217
        %s219 = sand.u32 %s44, 1
        %s220 = smul.addr %s219, 8
        %s221 = scalar_lea.vmem [#allocation2], %s220
        // Predicated region
        $region37: #{tpu_custom_call.1} parent=35 // pred_check
          %p222 = pneg %p57
        $region38: #{tpu_custom_call.1} parent=35 // pred_check_branch
          %224 = sbr.rel (%p222) target = $region40
        $region39: #{tpu_custom_call.1} parent=35 // pred_region
          %225 = dma.done %s218, 128
        $region40: #{tpu_custom_call.1} parent=35 // pred_fallthru
          _
        // Predicated region
        $region41: #{tpu_custom_call.1} parent=35 // pred_check
          %p226 = pneg %p83
        $region42: #{tpu_custom_call.1} parent=35 // pred_check_branch
          %228 = sbr.rel (%p226) target = $region44
        $region43: #{tpu_custom_call.1} parent=35 // pred_region
          %229 = dma.done [#allocation6], 128
        $region44: #{tpu_custom_call.1} parent=35 // pred_fallthru
          _
        %s230 = sand.u32 %s44, 1
        %s231 = scalar_lea.sflag [#allocation3], %s230
        %s232 = sand.u32 %s44, 1
        %s233 = smul.addr %s232, 8
        %s234 = scalar_lea.vmem [#allocation2], %s233
        %p235 = pneg %p57
        %p236 = pneg %p54
        %p237 = pneg %p83
        %p238 = pneg %p80
        %p239 = pneg %p104
        %p240 = pneg %p101
        %p241 = pneg %p125
        %p242 = pneg %p122
        %p243 = pneg %p153
        %p244 = pneg %p150
        %s245 = sand.u32 %s140, 1
        %s246 = scalar_lea.sflag [#allocation4], %s245
        %s247 = sand.u32 %s140, 1
        %s248 = smul.addr %s247, 8
        %s249 = scalar_lea.vmem [#allocation7], %s248
        %v250 = vld [vmem:[%s221] sm:$0xff]
        %v251 = vld [vmem:[#allocation5] sm:$0xff]
        %v252 = vadd.f32 %v250, %v251
        %vm253 = vcmask 261120
        %v254 = vsel %vm253, %v252, 0.0
        %255 = vadd.xlane.f32.xlu0 %v254
        %v256 = vpop.xlane.xlu0 %255
        %v257 = vrcp.pop 32.0
        %v258 = vmul.f32 %v256, %v257
        %v259 = vsub.f32 %v252, %v258
        %v260 = vmul.f32 %v259, %v259
        %v261 = vsel %vm253, %v260, 0.0
        %262 = vadd.xlane.f32.xlu0 %v261
        %v263 = vpop.xlane.xlu0 %262
        %v264 = vmul.f32 %v263, %v257
        %v265 = vadd.f32 %v264, 1e-05
        %v266 = vrsqrt.pop %v265
        %v267 = vmul.f32 %v259, %v266
        %v268 = vld [vmem:[%s2] sm:$0x1]
        %v270 = vlaneseq
        %v271 = vshrl.u32 %v270, 7
        %v272 = vsub.s32 0, %v271
        %v273 = vrot.slane %v268, %v272
        %v275 = vmul.f32 %v267, %v273
        %v276 = vld [vmem:[%s3] sm:$0x1]
        %v278 = vlaneseq
        %v279 = vshrl.u32 %v278, 7
        %v280 = vsub.s32 0, %v279
        %v281 = vrot.slane %v276, %v280
        %v283 = vadd.f32 %v275, %v281
        %284 = vst.msk [vmem:[%s249] sm:$0xff] %vm253, %v283
        %s285 = sand.u32 %s140, 1
        %s286 = scalar_lea.sflag [#allocation4], %s285
        %s287 = sand.u32 %s140, 1
        %s288 = smul.addr %s287, 8
        %s289 = scalar_lea.vmem [#allocation7], %s288
        // Predicated region
        $region45: #{tpu_custom_call.1} parent=35 // pred_check
          %p290 = pneg %p150
        $region46: #{tpu_custom_call.1} parent=35 // pred_check_branch
          %292 = sbr.rel (%p290) target = $region48
        $region47: #{tpu_custom_call.1} parent=35 // pred_region
          %s294 = ssub.s32 128, 128
          %295 = vsyncadd %s286, %s294
          %s296 = sadd.s32 %s27, %s26
          %s297 = smul.addr %s296, 128
          %s298 = scalar_lea.hbm %s4, %s297
          %s300 = sshll.u32 %s289, 4
          %s301 = int_to_ptr.vmem [resolvable:$true] %s300
          %303 = dma.vmem_to_hbm [thread:$0]  %s301, 128, %s298, %s286
        $region48: #{tpu_custom_call.1} parent=35 // pred_fallthru
          _
      $region36: #{tpu_custom_call.1} parent=5 // pred_fallthru
        _
      %p304 = scmp.le.s32.totalorder 2, %s17
      // Predicated region
      $region49: #{tpu_custom_call.1} parent=5 // pred_check
        %p305 = pneg %p304
      $region50: #{tpu_custom_call.1} parent=5 // pred_check_branch
        %307 = sbr.rel (%p305) target = $region52
      $region51: #{tpu_custom_call.1} parent=5 // pred_region
        %s308 = ssub.s32 %s17, 2
        // Predicated region
        $region53: #{tpu_custom_call.1} parent=51 // pred_check
          %p309 = pneg %p156
        $region54: #{tpu_custom_call.1} parent=51 // pred_check_branch
          %311 = sbr.rel (%p309) target = $region56
        $region55: #{tpu_custom_call.1} parent=51 // pred_region
          %s312 = sand.u32 %s141, 1
          %s313 = scalar_lea.sflag [#allocation4], %s312
          %s314 = sand.u32 %s141, 1
          %s315 = smul.addr %s314, 8
          %s316 = scalar_lea.vmem [#allocation7], %s315
          %317 = dma.done %s313, 128
        $region56: #{tpu_custom_call.1} parent=51 // pred_fallthru
          _
      $region52: #{tpu_custom_call.1} parent=5 // pred_fallthru
        _
    $region6: #{tpu_custom_call.1} parent=1 // loop_footer
      %s21 = sadd.s32 1, %s17
    $region7: #{tpu_custom_call.1} parent=1 // loop_footer_branch
      %16 = sbr.rel target = $region3
    $region8: #{tpu_custom_call.1} parent=1 // loop_exit
      _
    %318 = vsyncpa [#allocation3], 1
    %s319 = scalar_lea.sflag [#allocation3], 1
    %320 = vsyncpa %s319, 1
    %321 = vsyncpa [#allocation6], 1
    %322 = vsyncpa [#allocation4], 1
    %s323 = scalar_lea.sflag [#allocation4], 1
    %324 = vsyncpa %s323, 1

</llo_original>
